<compile_context>
chip_gen: v7x
topology: tpu7x:2x2x1
jax: 0.10.0
libtpu: 0.0.40
codegen_flags: <defaults>
</compile_context>

<pallas_src>
import jax
import jax.numpy as jnp
from jax.experimental import pallas as pl
from jax.experimental.pallas import tpu as pltpu


def _gating_kernel(x_ref, w1_ref, b1_ref, w2_ref, b2_ref, o_ref):
    # fc1: bf16 MXU matmul with f32 accumulate; bias + ReLU in f32.
    h = jnp.dot(x_ref[...], w1_ref[...],
                preferred_element_type=jnp.float32)           # (TB, Hp) f32
    h = jnp.maximum(h + b1_ref[...], 0.0)                     # ReLU

    # fc2 (tiny: Hp x E) kept in f32 for accuracy, plus bias.
    logits = jnp.dot(h, w2_ref[...],
                     preferred_element_type=jnp.float32)      # (TB, E) f32
    logits = logits + b2_ref[...]

    # Numerically-stable softmax over experts (== torch dim=1 for 2-D input).
    m = jnp.max(logits, axis=-1, keepdims=True)
    e = jnp.exp(logits - m)
    denom = jnp.sum(e, axis=-1, keepdims=True)
    # TODO(synk): the (TB, E=8) output store is lane-masked (E < 128); a
    # lane-dense repack before the store would need an in-kernel relayout that
    # Mosaic may reject for this layout, and the store traffic is negligible
    # next to the x DMA, so it is intentionally left as-is.
    o_ref[...] = (e * pl.reciprocal(denom, approx=True)).astype(o_ref.dtype)


def gating_network(x, w1, b1, w2, b2, *, block_b=4096):
    """softmax(relu(x @ w1 + b1) @ w2 + b2, axis=-1).

    x : (B, D) float; w1: (D, H); b1: (H,); w2: (H, E); b2: (E,)
    Weights are stored (in_features, out_features), i.e. nn.Linear.weight.T.
    """
    B, D = x.shape
    H = w1.shape[1]
    E = w2.shape[1]

    # Lane-dense hidden: zero-pad H (64) up to a multiple of 128.  Padded w1
    # columns / b1 entries are 0 (ReLU(0) = 0) and padded w2 rows are 0, so the
    # result is numerically identical.
    H_pad = max(128, ((H + 127) // 128) * 128)
    w1p = jnp.zeros((D, H_pad), jnp.bfloat16).at[:, :H].set(w1.astype(jnp.bfloat16))
    b1p = jnp.zeros((1, H_pad), jnp.float32).at[:, :H].set(b1.astype(jnp.float32))
    w2p = jnp.zeros((H_pad, E), jnp.float32).at[:H, :].set(w2.astype(jnp.float32))
    b2p = b2.astype(jnp.float32).reshape(1, E)

    # Adaptive batch tile: as large as comfortably fits a conservative VMEM
    # budget (x + out double-buffers dominate), multiple of 8, >= 8.
    # TODO(synk): for extremely large input_dim (w1 itself near the VMEM limit)
    # a K-reduction grid axis would be needed; not required for this module.
    bytes_per_row = D * 2 + E * 4                 # bf16 x row + f32 out row
    budget = 12 * 1024 * 1024                     # leaves headroom under 32 MiB
    tb_cap = max(8, (budget // (2 * bytes_per_row)) // 8 * 8)
    TB = min(block_b, tb_cap, ((B + 7) // 8) * 8)
    TB = max(8, (TB // 8) * 8)
    num_tiles = pl.cdiv(B, TB)
    B_pad = num_tiles * TB

    xb = x.astype(jnp.bfloat16)                   # halve the dominant HBM read
    if B_pad != B:
        xb = jnp.pad(xb, ((0, B_pad - B), (0, 0)))

    bf16_sz = 2
    cost = pl.CostEstimate(
        flops=2 * B_pad * (D * H_pad + H_pad * E),
        transcendentals=B_pad * (E + 1),
        bytes_accessed=(B_pad * D * bf16_sz + B_pad * E * 4
                        + D * H_pad * bf16_sz + (H_pad * E + H_pad + E) * 4),
    )

    out = pl.pallas_call(
        _gating_kernel,
        out_shape=jax.ShapeDtypeStruct((B_pad, E), jnp.float32),
        grid=(num_tiles,),
        in_specs=[
            pl.BlockSpec((TB, D), lambda i: (i, 0)),       # x: streamed per tile
            pl.BlockSpec((D, H_pad), lambda i: (0, 0)),    # weights: VMEM-resident
            pl.BlockSpec((1, H_pad), lambda i: (0, 0)),
            pl.BlockSpec((H_pad, E), lambda i: (0, 0)),
            pl.BlockSpec((1, E), lambda i: (0, 0)),
        ],
        out_specs=pl.BlockSpec((TB, E), lambda i: (i, 0)),
        compiler_params=pltpu.CompilerParams(
            dimension_semantics=("parallel",),
            vmem_limit_bytes=32 * 1024 * 1024),
        cost_estimate=cost,
    )(xb, w1p, b1p, w2p, b2p)

    return out[:B] if B_pad != B else out


def init_params(key, input_dim, num_experts, hidden=64):
    """Deterministic init mirroring nn.Linear default (U[-1/sqrt(fan_in), +])."""
    k1, k2, k3, k4 = jax.random.split(key, 4)
    lim1 = 1.0 / jnp.sqrt(input_dim)
    lim2 = 1.0 / jnp.sqrt(hidden)
    w1 = jax.random.uniform(k1, (input_dim, hidden), jnp.float32, -lim1, lim1)
    b1 = jax.random.uniform(k2, (hidden,), jnp.float32, -lim1, lim1)
    w2 = jax.random.uniform(k3, (hidden, num_experts), jnp.float32, -lim2, lim2)
    b2 = jax.random.uniform(k4, (num_experts,), jnp.float32, -lim2, lim2)
    return w1, b1, w2, b2


def _reference(x, w1, b1, w2, b2):
    # Match the kernel's arithmetic: bf16 inputs for fc1, f32 everywhere else.
    xf = x.astype(jnp.bfloat16).astype(jnp.float32)
    w1f = w1.astype(jnp.bfloat16).astype(jnp.float32)
    h = jnp.maximum(xf @ w1f + b1, 0.0)
    return jax.nn.softmax(h @ w2 + b2, axis=1)


if __name__ == "__main__":
    key = jax.random.PRNGKey(0)
    kx, kp, kx2 = jax.random.split(key, 3)

    # Small shapes consistent with the module.
    batch, input_dim, num_experts = 8, 32, 8
    x = jax.random.normal(kx, (batch, input_dim), jnp.float32)
    w1, b1, w2, b2 = init_params(kp, input_dim, num_experts)

    out = gating_network(x, w1, b1, w2, b2)
    out = jax.block_until_ready(out)

    ref = _reference(x, w1, b1, w2, b2)
    assert out.shape == (batch, num_experts)
    assert jnp.allclose(out, ref, atol=2e-2, rtol=2e-2)
    # approx=True reciprocal -> per-row sums equal 1 only to ~1e-3.
    assert jnp.allclose(jnp.sum(out, axis=1), 1.0, atol=5e-3)

    # Second run exercising the multi-tile grid + batch padding path.
    batch2 = 200
    x2 = jax.random.normal(kx2, (batch2, input_dim), jnp.float32)
    out2 = jax.block_until_ready(gating_network(x2, w1, b1, w2, b2, block_b=64))
    ref2 = _reference(x2, w1, b1, w2, b2)
    assert out2.shape == (batch2, num_experts)
    assert jnp.allclose(out2, ref2, atol=2e-2, rtol=2e-2)
    assert jnp.allclose(jnp.sum(out2, axis=1), 1.0, atol=5e-3)

    print("KERNEL_OK")
</pallas_src>

<mosaic_0001>
module attributes {stable_mosaic.version = 11 : i64} {
  func.func @_gating_kernel(%arg0: i32, %arg1: memref<8x32xbf16, #tpu.memory_space<vmem>>, %arg2: memref<32x128xbf16, #tpu.memory_space<vmem>>, %arg3: memref<1x128xf32, #tpu.memory_space<vmem>>, %arg4: memref<128x8xf32, #tpu.memory_space<vmem>>, %arg5: memref<1x8xf32, #tpu.memory_space<vmem>>, %arg6: memref<8x8xf32, #tpu.memory_space<vmem>>) attributes {dimension_semantics = [#tpu.dimension_semantics<parallel>], iteration_bounds = array<i64: 1>, scalar_prefetch = 0 : i64, scratch_operands = 0 : i64, tpu.core_type = #tpu.core_type<tc>, window_params = [{transform_indices = @transform_0, window_bounds = array<i64: 8, 32>}, {pipeline_mode = #tpu.pipeline_mode<synchronous>, transform_indices = @transform_1, window_bounds = array<i64: 32, 128>}, {pipeline_mode = #tpu.pipeline_mode<synchronous>, transform_indices = @transform_2, window_bounds = array<i64: 1, 128>}, {pipeline_mode = #tpu.pipeline_mode<synchronous>, transform_indices = @transform_3, window_bounds = array<i64: 128, 8>}, {pipeline_mode = #tpu.pipeline_mode<synchronous>, transform_indices = @transform_4, window_bounds = array<i64: 1, 8>}, {transform_indices = @transform_5, window_bounds = array<i64: 8, 8>}]} {
    %c0 = arith.constant 0 : index
    %c0_0 = arith.constant 0 : index
    %0 = vector.load %arg1[%c0, %c0_0] : memref<8x32xbf16, #tpu.memory_space<vmem>>, vector<8x32xbf16>
    %c0_1 = arith.constant 0 : index
    %c0_2 = arith.constant 0 : index
    %1 = vector.load %arg2[%c0_1, %c0_2] : memref<32x128xbf16, #tpu.memory_space<vmem>>, vector<32x128xbf16>
    %cst = arith.constant dense<0.000000e+00> : vector<8x128xf32>
    %2 = tpu.matmul %0, %1, %cst {dimension_numbers = #tpu.dot_dimension_numbers<[1], [0], [0], [1], [0, 0, 1, 1], [], []>} : vector<8x32xbf16>, vector<32x128xbf16>, vector<8x128xf32> -> vector<8x128xf32>
    %c0_3 = arith.constant 0 : index
    %c0_4 = arith.constant 0 : index
    %3 = vector.load %arg3[%c0_3, %c0_4] : memref<1x128xf32, #tpu.memory_space<vmem>>, vector<1x128xf32>
    %4 = vector.broadcast %3 : vector<1x128xf32> to vector<8x128xf32>
    %5 = arith.addf %2, %4 : vector<8x128xf32>
    %cst_5 = arith.constant 0.000000e+00 : f32
    %6 = vector.broadcast %cst_5 : f32 to vector<8x128xf32>
    %7 = arith.maximumf %5, %6 : vector<8x128xf32>
    %c0_6 = arith.constant 0 : index
    %c0_7 = arith.constant 0 : index
    %8 = vector.load %arg4[%c0_6, %c0_7] : memref<128x8xf32, #tpu.memory_space<vmem>>, vector<128x8xf32>
    %cst_8 = arith.constant dense<0.000000e+00> : vector<8x8xf32>
    %9 = tpu.matmul %7, %8, %cst_8 {dimension_numbers = #tpu.dot_dimension_numbers<[1], [0], [0], [1], [0, 0, 1, 1], [], []>} : vector<8x128xf32>, vector<128x8xf32>, vector<8x8xf32> -> vector<8x8xf32>
    %c0_9 = arith.constant 0 : index
    %c0_10 = arith.constant 0 : index
    %10 = vector.load %arg5[%c0_9, %c0_10] : memref<1x8xf32, #tpu.memory_space<vmem>>, vector<1x8xf32>
    %11 = vector.broadcast %10 : vector<1x8xf32> to vector<8x8xf32>
    %12 = arith.addf %9, %11 : vector<8x8xf32>
    %cst_11 = arith.constant dense<0xFF800000> : vector<8xf32>
    %13 = vector.multi_reduction <maximumf>, %12, %cst_11 [1] : vector<8x8xf32> to vector<8xf32>
    %14 = vector.shape_cast %13 : vector<8xf32> to vector<8x1xf32>
    %15 = vector.broadcast %14 : vector<8x1xf32> to vector<8x8xf32>
    %16 = arith.subf %12, %15 : vector<8x8xf32>
    %17 = math.exp %16 : vector<8x8xf32>
    %cst_12 = arith.constant dense<0.000000e+00> : vector<8xf32>
    %18 = vector.multi_reduction <add>, %17, %cst_12 [1] : vector<8x8xf32> to vector<8xf32>
    %19 = vector.shape_cast %18 : vector<8xf32> to vector<8x1xf32>
    %20 = tpu.reciprocal %19 {approx = true} : vector<8x1xf32> -> vector<8x1xf32>
    %21 = vector.broadcast %20 : vector<8x1xf32> to vector<8x8xf32>
    %22 = arith.mulf %17, %21 : vector<8x8xf32>
    %c0_13 = arith.constant 0 : index
    %c0_14 = arith.constant 0 : index
    %23 = vector.load %arg6[%c0_13, %c0_14] : memref<8x8xf32, #tpu.memory_space<vmem>>, vector<8x8xf32>
    tpu.vector_store %arg6[%c0_13, %c0_14], %22 {strides = array<i32>} : memref<8x8xf32, #tpu.memory_space<vmem>>, vector<8x8xf32>,
    return
  }
  func.func @transform_0(%arg0: i32) -> (i32, i32) {
    %c0_i32 = arith.constant 0 : i32
    %c0_i32_0 = arith.constant 0 : i32
    return %arg0, %c0_i32 : i32, i32
  }
  func.func @transform_1(%arg0: i32) -> (i32, i32) {
    %c0_i32 = arith.constant 0 : i32
    %c0_i32_0 = arith.constant 0 : i32
    %c0_i32_1 = arith.constant 0 : i32
    return %c0_i32, %c0_i32_0 : i32, i32
  }
  func.func @transform_2(%arg0: i32) -> (i32, i32) {
    %c0_i32 = arith.constant 0 : i32
    %c0_i32_0 = arith.constant 0 : i32
    %c0_i32_1 = arith.constant 0 : i32
    return %c0_i32, %c0_i32_0 : i32, i32
  }
  func.func @transform_3(%arg0: i32) -> (i32, i32) {
    %c0_i32 = arith.constant 0 : i32
    %c0_i32_0 = arith.constant 0 : i32
    %c0_i32_1 = arith.constant 0 : i32
    return %c0_i32, %c0_i32_0 : i32, i32
  }
  func.func @transform_4(%arg0: i32) -> (i32, i32) {
    %c0_i32 = arith.constant 0 : i32
    %c0_i32_0 = arith.constant 0 : i32
    %c0_i32_1 = arith.constant 0 : i32
    return %c0_i32, %c0_i32_0 : i32, i32
  }
  func.func @transform_5(%arg0: i32) -> (i32, i32) {
    %c0_i32 = arith.constant 0 : i32
    %c0_i32_0 = arith.constant 0 : i32
    return %arg0, %c0_i32 : i32, i32
  }
}

</mosaic_0001>

<llo_original>
// kernel: tpu_custom_call.1
$region0: #{tpu_custom_call.1}
  #allocation0 [shape = 'u32[]', space=smem, size = 0x4, offset = 0x4, fixed_abs, tag = 'smem constant byte address 0x4 - core index']
  #allocation1 [shape = 'u32[144,128]{1,0:T(1,128)}', space=vmem, size = 0x12000, scoped, tag = 'internal scratch']
  %s0 = inlined_call_operand.vmem [shape: bf16[8,32], index: 0, kind: input, shape index: {}]
  %s1 = inlined_call_operand.vmem [shape: bf16[32,128], index: 1, kind: input, shape index: {}]
  %s2 = inlined_call_operand.vmem [shape: f32[1,128], index: 2, kind: input, shape index: {}]
  %s3 = inlined_call_operand.vmem [shape: f32[128,8], index: 3, kind: input, shape index: {}]
  %s4 = inlined_call_operand.vmem [shape: f32[1,8], index: 4, kind: input, shape index: {}]
  %s5 = inlined_call_operand.hbm [shape: f32[8,8], index: 5, kind: output, shape index: {}]
  %s6 = sld [smem:[#allocation0]]
  $region30: #{tpu_custom_call.1} parent=0
    _
  %s8 = ssub.s32 1, %s6
  %s9 = scalar_select 0, %s8, %s6
  $region1: #{tpu_custom_call.1} parent=0
    #allocation2 [shape = 'u8[4096]{0}', space=vmem, size = 0x1000, scoped, tag = 'output window, operand 0, single buffered']
    #allocation3 [shape = 's32[1]{0}', space=sflag, size = 0x4, scoped, tag = 'scoped memory for tpu_custom_call.1']
    %10 = vsyncpa [#allocation3], 0
    // Predicated region
    $region2: #{tpu_custom_call.1} parent=1 // pred_check
      _
    $region3: #{tpu_custom_call.1} parent=1 // pred_check_branch
      %12 = sbr.rel (0) target = $region5
    $region4: #{tpu_custom_call.1} parent=1 // pred_region
      _
    $region5: #{tpu_custom_call.1} parent=1 // pred_fallthru
      _
    // Predicated region
    $region6: #{tpu_custom_call.1} parent=1 // pred_check
      _
    $region7: #{tpu_custom_call.1} parent=1 // pred_check_branch
      %14 = sbr.rel (0) target = $region9
    $region8: #{tpu_custom_call.1} parent=1 // pred_region
      _
    $region9: #{tpu_custom_call.1} parent=1 // pred_fallthru
      _
    // Predicated region
    $region10: #{tpu_custom_call.1} parent=1 // pred_check
      _
    $region11: #{tpu_custom_call.1} parent=1 // pred_check_branch
      %16 = sbr.rel (0) target = $region13
    $region12: #{tpu_custom_call.1} parent=1 // pred_region
      _
    $region13: #{tpu_custom_call.1} parent=1 // pred_fallthru
      _
    // Predicated region
    $region14: #{tpu_custom_call.1} parent=1 // pred_check
      _
    $region15: #{tpu_custom_call.1} parent=1 // pred_check_branch
      %18 = sbr.rel (0) target = $region17
    $region16: #{tpu_custom_call.1} parent=1 // pred_region
      _
    $region17: #{tpu_custom_call.1} parent=1 // pred_fallthru
      _
    // Predicated region
    $region18: #{tpu_custom_call.1} parent=1 // pred_check
      _
    $region19: #{tpu_custom_call.1} parent=1 // pred_check_branch
      %20 = sbr.rel (0) target = $region21
    $region20: #{tpu_custom_call.1} parent=1 // pred_region
      _
    $region21: #{tpu_custom_call.1} parent=1 // pred_fallthru
      _
    %v22 = vld [vmem:[%s0] sm:$0xf]
    %v23 = vld [vmem:[%s1] sm:$0xf]
    %v24 = vld [vmem:[%s1 + $0x4] sm:$0xf]
    %v25 = vld [vmem:[%s1 + $0x8] sm:$0xf]
    %v26 = vld [vmem:[%s1 + $0xc] sm:$0xf]
    %v27 = vld [vmem:[%s2] sm:$0x1]
    %v29 = vlaneseq
    %v30 = vshrl.u32 %v29, 7
    %v31 = vsub.s32 0, %v30
    %v32 = vrot.slane %v27, %v31
    %v38 = vunpack.c.l.b16 %v23
    %v39 = vunpack.c.l.b16 %v24
    %v40 = vunpack.c.l.b16 %v25
    %v41 = vunpack.c.l.b16 %v26
    %v42 = vpack.c.b16 %v39, %v38
    %v43 = vpack.c.b16 %v41, %v40
    %vm46 = vcmask 261120
    %v48 = vsel %vm46, %v22, 0
    %50 = vmatprep.subr.bf16.mxu0 0
    %51 = vmatpush1.bf16.msra.mxu0 %v42
    %52 = vmatprep.subr.bf16.mxu0 0
    %53 = vmatpush1.bf16.msra.mxu0 %v43
    %54 = vmatprep.subr.bf16.mxu0 0
    %55 = vmatpush1.bf16.msra.mxu0 0
    %56 = vmatprep.subr.bf16.mxu0 0
    %57 = vmatpush1.bf16.msra.mxu0 0
    %58 = vmatprep.subr.bf16.mxu0 0
    %59 = vmatpush1.bf16.msra.mxu0 0
    %60 = vmatprep.subr.bf16.mxu0 0
    %61 = vmatpush1.bf16.msra.mxu0 0
    %62 = vmatprep.subr.bf16.mxu0 0
    %63 = vmatpush1.bf16.msra.mxu0 0
    %64 = vmatprep.subr.bf16.mxu0 0
    %65 = vmatpush1.bf16.msra.mxu0 0
    %66 = vmatprep.subr.bf16.mxu0 0
    %67 = vmatpush1.bf16.msra.mxu0 0
    %68 = vmatprep.subr.bf16.mxu0 0
    %69 = vmatpush1.bf16.msra.mxu0 0
    %70 = vmatprep.subr.bf16.mxu0 0
    %71 = vmatpush1.bf16.msra.mxu0 0
    %72 = vmatprep.subr.bf16.mxu0 0
    %73 = vmatpush1.bf16.msra.mxu0 0
    %74 = vmatprep.subr.bf16.mxu0 0
    %75 = vmatpush1.bf16.msra.mxu0 0
    %76 = vmatprep.subr.bf16.mxu0 0
    %77 = vmatpush1.bf16.msra.mxu0 0
    %78 = vmatprep.subr.bf16.mxu0 0
    %79 = vmatpush1.bf16.msra.mxu0 0
    %80 = vmatprep.subr.bf16.mxu0 0
    %81 = vmatpush1.bf16.msra.mxu0 0
    %82 = vmatprep.mubr.bf16.mxu0 0
    %83 = vmatmul.mubr.bf16.gmra.mrb[0].mxu0 %v48
    %v84 = vpop.f32.mrb[0].mxu0
    %v85 = vadd.f32 %v32, %v84
    %v86 = vpop.f32.mrb[0].mxu0
    %v87 = vpop.f32.mrb[0].mxu0
    %v88 = vpop.f32.mrb[0].mxu0
    %89 = vdwg.mxu0
    %v90 = vmax.f32 %v85, 0.0
    %v91 = vld [vmem:[%s3] sm:$0xff]
    %v92 = vld [vmem:[%s3 + $0x8] sm:$0xff]
    %v93 = vld [vmem:[%s3 + $0x10] sm:$0xff]
    %v94 = vld [vmem:[%s3 + $0x18] sm:$0xff]
    %v95 = vld [vmem:[%s3 + $0x20] sm:$0xff]
    %v96 = vld [vmem:[%s3 + $0x28] sm:$0xff]
    %v97 = vld [vmem:[%s3 + $0x30] sm:$0xff]
    %v98 = vld [vmem:[%s3 + $0x38] sm:$0xff]
    %v99 = vld [vmem:[%s3 + $0x40] sm:$0xff]
    %v100 = vld [vmem:[%s3 + $0x48] sm:$0xff]
    %v101 = vld [vmem:[%s3 + $0x50] sm:$0xff]
    %v102 = vld [vmem:[%s3 + $0x58] sm:$0xff]
    %v103 = vld [vmem:[%s3 + $0x60] sm:$0xff]
    %v104 = vld [vmem:[%s3 + $0x68] sm:$0xff]
    %v105 = vld [vmem:[%s3 + $0x70] sm:$0xff]
    %v106 = vld [vmem:[%s3 + $0x78] sm:$0xff]
    %v107 = vld [vmem:[%s4] sm:$0x1]
    %v109 = vlaneseq
    %v110 = vshrl.u32 %v109, 7
    %v111 = vsub.s32 0, %v110
    %v112 = vrot.slane %v107, %v111
    %114 = vmatprep.subr.mxu0 0.0
    %115 = vmatpush1.msra.mxu0 %v91
    %116 = vmatprep.subr.mxu0 0.0
    %117 = vmatpush1.msra.mxu0 %v92
    %118 = vmatprep.subr.mxu0 0.0
    %119 = vmatpush1.msra.mxu0 %v93
    %120 = vmatprep.subr.mxu0 0.0
    %121 = vmatpush1.msra.mxu0 %v94
    %122 = vmatprep.subr.mxu0 0.0
    %123 = vmatpush1.msra.mxu0 %v95
    %124 = vmatprep.subr.mxu0 0.0
    %125 = vmatpush1.msra.mxu0 %v96
    %126 = vmatprep.subr.mxu0 0.0
    %127 = vmatpush1.msra.mxu0 %v97
    %128 = vmatprep.subr.mxu0 0.0
    %129 = vmatpush1.msra.mxu0 %v98
    %130 = vmatprep.subr.mxu0 0.0
    %131 = vmatpush1.msra.mxu0 %v99
    %132 = vmatprep.subr.mxu0 0.0
    %133 = vmatpush1.msra.mxu0 %v100
    %134 = vmatprep.subr.mxu0 0.0
    %135 = vmatpush1.msra.mxu0 %v101
    %136 = vmatprep.subr.mxu0 0.0
    %137 = vmatpush1.msra.mxu0 %v102
    %138 = vmatprep.subr.mxu0 0.0
    %139 = vmatpush1.msra.mxu0 %v103
    %140 = vmatprep.subr.mxu0 0.0
    %141 = vmatpush1.msra.mxu0 %v104
    %142 = vmatprep.subr.mxu0 0.0
    %143 = vmatpush1.msra.mxu0 %v105
    %144 = vmatprep.subr.mxu0 0.0
    %145 = vmatpush1.msra.mxu0 %v106
    %146 = vmatprep.subr.mxu0 0.0
    %147 = vmatpush1.msra.mxu0 0.0
    %148 = vmatprep.subr.mxu0 0.0
    %149 = vmatpush1.msra.mxu0 0.0
    %150 = vmatprep.subr.mxu0 0.0
    %151 = vmatpush1.msra.mxu0 0.0
    %152 = vmatprep.subr.mxu0 0.0
    %153 = vmatpush1.msra.mxu0 0.0
    %154 = vmatprep.subr.mxu0 0.0
    %155 = vmatpush1.msra.mxu0 0.0
    %156 = vmatprep.subr.mxu0 0.0
    %157 = vmatpush1.msra.mxu0 0.0
    %158 = vmatprep.subr.mxu0 0.0
    %159 = vmatpush1.msra.mxu0 0.0
    %160 = vmatprep.subr.mxu0 0.0
    %161 = vmatpush1.msra.mxu0 0.0
    %162 = vmatprep.subr.mxu0 0.0
    %163 = vmatpush1.msra.mxu0 0.0
    %164 = vmatprep.subr.mxu0 0.0
    %165 = vmatpush1.msra.mxu0 0.0
    %166 = vmatprep.subr.mxu0 0.0
    %167 = vmatpush1.msra.mxu0 0.0
    %168 = vmatprep.subr.mxu0 0.0
    %169 = vmatpush1.msra.mxu0 0.0
    %170 = vmatprep.subr.mxu0 0.0
    %171 = vmatpush1.msra.mxu0 0.0
    %172 = vmatprep.subr.mxu0 0.0
    %173 = vmatpush1.msra.mxu0 0.0
    %174 = vmatprep.subr.mxu0 0.0
    %175 = vmatpush1.msra.mxu0 0.0
    %176 = vmatprep.subr.mxu0 0.0
    %177 = vmatpush1.msra.mxu0 0.0
    %178 = vmatprep.mubr.f32.mxu0 0.0
    %179 = vmatmul.mubr.f32.gmra.mrb[0].mxu0 %v90
    %v180 = vpop.f32.mrb[0].mxu0
    %v181 = vadd.f32 %v112, %v180
    %v182 = vpop.f32.mrb[0].mxu0
    %183 = vdwg.mxu0
    %vm184 = vcmask 64512
    %v185 = vsel %vm184, %v181, -inf
    %186 = vmax.xlane.f32.xlu0 %v185
    %v187 = vpop.xlane.xlu0 %186
    %v188 = vsub.f32 %v181, %v187
    %v189 = vmul.f32 %v188, 1.442695
    %v190 = vpow.pop %v189
    %v191 = vsel %vm184, %v190, 0.0
    %192 = vadd.xlane.f32.xlu0 %v191
    %v193 = vpop.xlane.xlu0 %192
    %v194 = vrcp.pop %v193
    %v195 = vmul.f32 %v190, %v194
    %196 = vst.msk [vmem:[#allocation2] sm:$0xff] %vm184, %v195
    // Predicated region
    $region22: #{tpu_custom_call.1} parent=1 // pred_check
      _
    $region23: #{tpu_custom_call.1} parent=1 // pred_check_branch
      %198 = sbr.rel (0) target = $region25
    $region24: #{tpu_custom_call.1} parent=1 // pred_region
      %s200 = ssub.s32 128, 128
      %201 = vsyncadd [#allocation3], %s200
      %s203 = sshll.u32 [#allocation2], 4
      %s204 = int_to_ptr.vmem [resolvable:$true] %s203
      %206 = dma.vmem_to_hbm [thread:$0]  %s204, 128, %s5, [#allocation3]
    $region25: #{tpu_custom_call.1} parent=1 // pred_fallthru
      _
    // Predicated region
    $region26: #{tpu_custom_call.1} parent=1 // pred_check
      _
    $region27: #{tpu_custom_call.1} parent=1 // pred_check_branch
      %208 = sbr.rel (0) target = $region29
    $region28: #{tpu_custom_call.1} parent=1 // pred_region
      %209 = dma.done [#allocation3], 128
    $region29: #{tpu_custom_call.1} parent=1 // pred_fallthru
      _
    %210 = vsyncpa [#allocation3], 1

</llo_original>
